<compile_context>
chip_gen: v7x
topology: tpu7x:2x2x1
jax: 0.10.0
libtpu: 0.0.40
codegen_flags: <defaults>
</compile_context>

<pallas_src>
import jax
import jax.numpy as jnp
from jax.experimental import pallas as pl
from jax.experimental.pallas import tpu as pltpu


_NEG_LARGE = -1e30  # bias for padded output columns (excluded from the log-sum-exp)

# Cached capability probe: does this jax build accept pipeline_mode=pl.Buffered(1)
# on the resident weight/bias specs?  None = unknown, True/False after first call.
_SB_STATE = {"ok": None}


def _round_up(v, m):
    return (v + m - 1) // m * m


def _pad2d(a, shape):
    pads = [(0, t - s) for s, t in zip(a.shape, shape)]
    if any(p[1] for p in pads):
        a = jnp.pad(a, pads)
    return a


def _device_kind():
    try:
        return jax.devices()[0].device_kind.lower()
    except Exception:
        return ""


def _vmem_capacity_bytes():
    try:
        return int(pltpu.get_tpu_info().vmem_capacity_bytes)
    except Exception:
        pass
    return (64 << 20) if "v7" in _device_kind() else (128 << 20)


def _default_row_tile_pref():
    # v7x has 64 MiB VMEM/TC -> keep tm at 256; v5e/v6e (128 MiB) -> 512.
    return 256 if "v7" in _device_kind() else 512


def _select_row_tile(R, tm_pref):
    """Pick a row tile <= tm_pref (multiple of 8) keeping pad waste under ~6%."""
    r8 = _round_up(max(R, 1), 8)
    tm_pref = _round_up(tm_pref, 8)
    if r8 <= tm_pref:
        return r8  # single tile, zero waste
    cands = []
    for c in (tm_pref, 512, 256, 128, 64, 32, 16, 8):
        if c <= tm_pref and c not in cands:
            cands.append(c)
    for c in cands:
        rp = _round_up(r8, c)
        if (rp - R) / rp <= 0.0625:
            return c
    return 8


# -----------------------------------------------------------------------------
# Kernels
# -----------------------------------------------------------------------------
def _kd_forward_kernel(x_ref, w_ref, b_ref, org_ref, kd_ref):
    # x_ref: (TM, Hin_p) bf16   w_ref: (Hin_p, Hout_p) bf16   b_ref: (1, Hout_p) f32
    # bf16 operands go straight to the MXU; accumulate in f32.
    y = jnp.dot(x_ref[...], w_ref[...], preferred_element_type=jnp.float32)
    y = y + b_ref[...]
    org_ref[...] = y.astype(org_ref.dtype)

    # KD transform: numerically-stable log_softmax over the last axis (f32).
    # Padded columns carry a -1e30 bias so exp() underflows to 0 and they do not
    # perturb the log-sum-exp of the real columns.
    m = jnp.max(y, axis=-1, keepdims=True)
    s = y - m
    lse = jnp.log(jnp.sum(jnp.exp(s), axis=-1, keepdims=True))
    kd_ref[...] = (s - lse).astype(kd_ref.dtype)


def _linear_kernel(x_ref, w_ref, b_ref, org_ref):
    # Fast path when KD is disabled: no transform math, no kd output at all.
    y = jnp.dot(x_ref[...], w_ref[...], preferred_element_type=jnp.float32)
    org_ref[...] = (y + b_ref[...]).astype(org_ref.dtype)


# -----------------------------------------------------------------------------
# pallas_call wrapper
# -----------------------------------------------------------------------------
def _fused_call(x_p, w_p, b_p, *, tm, with_kd, out_dtype, kd_dtype, single_buffer_w):
    R_p, H_in_p = x_p.shape
    H_out_p = w_p.shape[1]
    grid = (R_p // tm,)

    def _resident(shape):
        # W / bias never change across the (row) grid -> keep them VMEM-resident;
        # single-buffered to avoid doubling the largest VMEM consumer.
        if single_buffer_w:
            return pl.BlockSpec(shape, lambda i: (0, 0), pipeline_mode=pl.Buffered(1))
        return pl.BlockSpec(shape, lambda i: (0, 0))

    in_specs = [
        pl.BlockSpec((tm, H_in_p), lambda i: (i, 0)),   # x tile streams
        _resident((H_in_p, H_out_p)),                   # W resident across grid
        _resident((1, H_out_p)),                        # bias resident across grid
    ]

    isz = lambda dt: jnp.dtype(dt).itemsize
    w_bufs = 1 if single_buffer_w else 2

    # VMEM budget: resident W/bias + double-buffered x / org / kd tiles + headroom.
    vmem_need = (
        H_in_p * H_out_p * x_p.dtype.itemsize * 0  # (placeholder, W uses own dtype)
        + H_in_p * H_out_p * w_p.dtype.itemsize * w_bufs
        + H_out_p * b_p.dtype.itemsize * w_bufs
        + tm * H_in_p * x_p.dtype.itemsize * 2
        + tm * H_out_p * isz(out_dtype) * 2
        + (tm * H_out_p * isz(kd_dtype) * 2 if with_kd else 0)
    )
    cap = _vmem_capacity_bytes()
    vmem_limit = min(max(int(vmem_need * 1.3) + (2 << 20), 32 << 20), int(cap * 0.9))

    out_bytes = R_p * H_out_p * isz(out_dtype)
    kd_bytes = R_p * H_out_p * isz(kd_dtype) if with_kd else 0
    nbytes = lambda a: a.size * a.dtype.itemsize
    cost = pl.CostEstimate(
        flops=2 * R_p * H_in_p * H_out_p,
        transcendentals=(R_p * H_out_p + R_p) if with_kd else 0,
        bytes_accessed=nbytes(x_p) + nbytes(w_p) + nbytes(b_p) + out_bytes + kd_bytes,
    )

    compiler_params = pltpu.CompilerParams(
        # Row axis is fully independent -> megacore-shardable; no-op on v5e/v6e.
        # TODO(synk): verify in xprof that v7x actually shards this axis across its
        # 2 TensorCores; if not, switch to pltpu.CORE_PARALLEL / explicit core axis.
        dimension_semantics=("parallel",),
        vmem_limit_bytes=vmem_limit,
    )

    if with_kd:
        out_shape = (
            jax.ShapeDtypeStruct((R_p, H_out_p), out_dtype),
            jax.ShapeDtypeStruct((R_p, H_out_p), kd_dtype),
        )
        out_specs = [
            pl.BlockSpec((tm, H_out_p), lambda i: (i, 0)),
            pl.BlockSpec((tm, H_out_p), lambda i: (i, 0)),
        ]
        kernel = _kd_forward_kernel
    else:
        out_shape = jax.ShapeDtypeStruct((R_p, H_out_p), out_dtype)
        out_specs = pl.BlockSpec((tm, H_out_p), lambda i: (i, 0))
        kernel = _linear_kernel

    return pl.pallas_call(
        kernel,
        out_shape=out_shape,
        grid_spec=pltpu.PrefetchScalarGridSpec(
            num_scalar_prefetch=0,
            grid=grid,
            in_specs=in_specs,
            out_specs=out_specs,
        ),
        compiler_params=compiler_params,
        cost_estimate=cost,
    )(x_p, w_p, b_p)


def _call_with_fallback(call_fn):
    """Try single-buffered resident W/bias (pl.Buffered(1)); fall back once if
    this jax/Mosaic version rejects pipeline_mode."""
    if _SB_STATE["ok"] is False:
        return call_fn(False)
    if _SB_STATE["ok"] is True:
        return call_fn(True)
    try:
        out = call_fn(True)
        jax.block_until_ready(out)  # only the very first call forces a sync
        _SB_STATE["ok"] = True
        return out
    except Exception:
        _SB_STATE["ok"] = False
        return call_fn(False)


def kd_linear_logsoftmax(x_2d, w, b, *, with_kd=True, row_tile=None,
                         mxu_dtype=jnp.bfloat16, kd_dtype=jnp.float32):
    """Fused Linear (+ optional log_softmax KD transform).

    x_2d: [R, H_in], w: [H_in, H_out], b: [H_out].
    Returns (org, kd); kd is None when with_kd=False.

    Production note: row_tile should be >= 128 (prefer 256/512); tiny tiles are
    for tests only (M=8 MXU tiles waste >90% of the MXU).
    """
    R, H_in = x_2d.shape
    H_out = w.shape[1]

    # Lane-dense padding: last dims to multiples of 128 (unmasked stores, full
    # MXU N dimension).
    H_in_p = _round_up(H_in, 128)
    H_out_p = _round_up(H_out, 128)

    # Row tiling: stream x / outputs through VMEM TM rows at a time while W and
    # bias stay resident.  Generation-aware default, padding-waste-aware shrink.
    # TODO(synk): for very large H (W block > ~20 MiB, esp. v7x 64 MiB VMEM), add
    # an H_out grid axis with per-N-block weight streaming and a flash-style
    # online max/LSE accumulator instead of holding a full (TM, H_out_p) row block.
    r8 = _round_up(max(R, 1), 8)
    if row_tile is not None:
        tm = min(_round_up(row_tile, 8), r8)
    else:
        tm = _select_row_tile(R, _default_row_tile_pref())
    R_p = _round_up(r8, tm)

    # MXU-friendly operand dtype: bf16 operands, f32 accumulation.
    op_dtype = x_2d.dtype
    if jnp.dtype(op_dtype).itemsize > 2:
        op_dtype = mxu_dtype
    x_p = _pad2d(x_2d.astype(op_dtype), (R_p, H_in_p))
    w_p = _pad2d(w.astype(op_dtype), (H_in_p, H_out_p))
    # Bias stays f32; padded output columns get -1e30 so they drop out of the LSE.
    b_p = jnp.full((1, H_out_p), _NEG_LARGE, dtype=jnp.float32)
    b_p = b_p.at[0, :H_out].set(b.astype(jnp.float32))

    out_dtype = x_2d.dtype
    out = _call_with_fallback(
        lambda sb: _fused_call(x_p, w_p, b_p, tm=tm, with_kd=with_kd,
                               out_dtype=out_dtype, kd_dtype=kd_dtype,
                               single_buffer_w=sb))

    if with_kd:
        org_p, kd_p = out
    else:
        org_p, kd_p = out, None

    # Crop only when padding actually happened (a full-size crop would add an
    # extra HBM read+write pass of the outputs).  Note: padded org columns hold
    # ~-1e30 (from the bias trick), so the crop is mandatory whenever H_out_p > H_out.
    if R_p != R or H_out_p != H_out:
        org = org_p[:R, :H_out]
        kd = kd_p[:R, :H_out] if kd_p is not None else None
    else:
        org, kd = org_p, kd_p
    return org, kd


# -----------------------------------------------------------------------------
# Module wrapper (JAX analogue of the PyTorch KDModuleWrapper)
# -----------------------------------------------------------------------------
class KDModuleWrapper:
    KD_TRANSFORMED_BUFFER = "kd_last_transformed"

    def __init__(self, weight, bias, hidden_size, fsdp_active=False,
                 offload_output=False, row_tile=None, kd_dtype=jnp.float32):
        self.weight = weight          # [H_in, H_out]
        self.bias = bias              # [H_out]
        self.hidden_size = hidden_size
        self._fsdp_active = fsdp_active
        self._save_active = False
        self.offload_output = offload_output
        self.kd_enabled = False
        self.row_tile = row_tile
        self.kd_dtype = kd_dtype      # f32 matches torch.zeros buffer; bf16 halves writeback
        # register_buffer(..., torch.zeros(hidden_size))
        self.kd_last_transformed = jnp.zeros(hidden_size, dtype=kd_dtype)
        # TODO(synk): state_dict / load_state_dict / named_modules / FSDP / save
        # hooks are framework bookkeeping with no Pallas/JAX equivalent.

    def _run(self, x, with_kd):
        B, S, H = x.shape
        x_2d = x.reshape(B * S, H)
        org, kd = kd_linear_logsoftmax(
            x_2d, self.weight, self.bias, with_kd=with_kd,
            row_tile=self.row_tile, kd_dtype=self.kd_dtype)
        org = org.reshape(B, S, -1)
        kd = kd.reshape(B, S, -1) if kd is not None else None
        return org, kd

    def forward(self, x):
        if not self.kd_enabled:
            # Fast path: linear-only kernel (no transform compute, no kd writeback).
            org, _ = self._run(x, with_kd=False)
            return org
        org, transformed = self._run(x, with_kd=True)
        if self.offload_output:
            # device_put dispatch is asynchronous; the D2H copy overlaps the next layer.
            transformed = jax.device_put(transformed, jax.devices("cpu")[0])
        self.kd_last_transformed = transformed
        return org

    __call__ = forward


if __name__ == "__main__":
    B, S, H = 2, 8, 32  # batch, seq, hidden

    key = jax.random.PRNGKey(0)
    k_x, k_w, k_b = jax.random.split(key, 3)
    x = jax.random.normal(k_x, (B, S, H), dtype=jnp.float32)
    # deterministic "Linear(H, H)" parameters
    w = jax.random.normal(k_w, (H, H), dtype=jnp.float32) * (1.0 / jnp.sqrt(H))
    b = jax.random.normal(k_b, (H,), dtype=jnp.float32) * 0.01

    wrapper = KDModuleWrapper(w, b, hidden_size=(B, S, H), offload_output=False)

    # KD disabled: fast path (linear only)
    plain_out = wrapper(x)
    jax.block_until_ready(plain_out)

    # KD enabled: fused linear + log_softmax, buffer updated
    wrapper.kd_enabled = True
    org_out = wrapper(x)
    jax.block_until_ready(org_out)
    jax.block_until_ready(wrapper.kd_last_transformed)

    # Reference: same bf16-operand / f32-accumulation matmul the MXU performs.
    ref_org = jnp.einsum("bsh,hk->bsk",
                         x.astype(jnp.bfloat16), w.astype(jnp.bfloat16),
                         preferred_element_type=jnp.float32) + b
    ref_kd = jax.nn.log_softmax(ref_org, axis=-1)

    assert jnp.allclose(plain_out, ref_org, atol=2e-3, rtol=2e-3)
    assert jnp.allclose(org_out, ref_org, atol=2e-3, rtol=2e-3)
    assert jnp.allclose(wrapper.kd_last_transformed, ref_kd, atol=2e-3, rtol=2e-3)
    assert wrapper.kd_last_transformed.shape == (B, S, H)
    assert wrapper.kd_last_transformed.dtype == jnp.float32

    # Multi-tile pipeline path.  Test-only tiny row tile; production tiles >= 128.
    wrapper_tiled = KDModuleWrapper(w, b, hidden_size=(B, S, H), row_tile=8)
    wrapper_tiled.kd_enabled = True
    org_tiled = wrapper_tiled(x)
    jax.block_until_ready(org_tiled)
    jax.block_until_ready(wrapper_tiled.kd_last_transformed)
    assert jnp.allclose(org_tiled, ref_org, atol=2e-3, rtol=2e-3)
    assert jnp.allclose(wrapper_tiled.kd_last_transformed, ref_kd, atol=2e-3, rtol=2e-3)

    print("KERNEL_OK")
</pallas_src>

<mosaic_0001>
module attributes {stable_mosaic.version = 11 : i64} {
  func.func @_linear_kernel(%arg0: i32, %arg1: memref<16x128xbf16, #tpu.memory_space<vmem>>, %arg2: memref<128x128xbf16, #tpu.memory_space<vmem>>, %arg3: memref<1x128xf32, #tpu.memory_space<vmem>>, %arg4: memref<16x128xf32, #tpu.memory_space<vmem>>) attributes {dimension_semantics = [#tpu.dimension_semantics<parallel>], iteration_bounds = array<i64: 1>, scalar_prefetch = 0 : i64, scratch_operands = 0 : i64, tpu.core_type = #tpu.core_type<tc>, window_params = [{transform_indices = @transform_0, window_bounds = array<i64: 16, 128>}, {pipeline_mode = #tpu.pipeline_mode<synchronous>, transform_indices = @transform_1, window_bounds = array<i64: 128, 128>}, {pipeline_mode = #tpu.pipeline_mode<synchronous>, transform_indices = @transform_2, window_bounds = array<i64: 1, 128>}, {transform_indices = @transform_3, window_bounds = array<i64: 16, 128>}]} {
    %c0 = arith.constant 0 : index
    %c0_0 = arith.constant 0 : index
    %0 = vector.load %arg1[%c0, %c0_0] : memref<16x128xbf16, #tpu.memory_space<vmem>>, vector<16x128xbf16>
    %c0_1 = arith.constant 0 : index
    %c0_2 = arith.constant 0 : index
    %1 = vector.load %arg2[%c0_1, %c0_2] : memref<128x128xbf16, #tpu.memory_space<vmem>>, vector<128x128xbf16>
    %cst = arith.constant dense<0.000000e+00> : vector<16x128xf32>
    %2 = tpu.matmul %0, %1, %cst {dimension_numbers = #tpu.dot_dimension_numbers<[1], [0], [0], [1], [0, 0, 1, 1], [], []>} : vector<16x128xbf16>, vector<128x128xbf16>, vector<16x128xf32> -> vector<16x128xf32>
    %c0_3 = arith.constant 0 : index
    %c0_4 = arith.constant 0 : index
    %3 = vector.load %arg3[%c0_3, %c0_4] : memref<1x128xf32, #tpu.memory_space<vmem>>, vector<1x128xf32>
    %4 = vector.broadcast %3 : vector<1x128xf32> to vector<16x128xf32>
    %5 = arith.addf %2, %4 : vector<16x128xf32>
    %c0_5 = arith.constant 0 : index
    %c0_6 = arith.constant 0 : index
    %6 = vector.load %arg4[%c0_5, %c0_6] : memref<16x128xf32, #tpu.memory_space<vmem>>, vector<16x128xf32>
    tpu.vector_store %arg4[%c0_5, %c0_6], %5 {strides = array<i32>} : memref<16x128xf32, #tpu.memory_space<vmem>>, vector<16x128xf32>,
    return
  }
  func.func @transform_0(%arg0: i32) -> (i32, i32) {
    %c0_i32 = arith.constant 0 : i32
    %c0_i32_0 = arith.constant 0 : i32
    return %arg0, %c0_i32 : i32, i32
  }
  func.func @transform_1(%arg0: i32) -> (i32, i32) {
    %c0_i32 = arith.constant 0 : i32
    %c0_i32_0 = arith.constant 0 : i32
    %c0_i32_1 = arith.constant 0 : i32
    return %c0_i32, %c0_i32_0 : i32, i32
  }
  func.func @transform_2(%arg0: i32) -> (i32, i32) {
    %c0_i32 = arith.constant 0 : i32
    %c0_i32_0 = arith.constant 0 : i32
    %c0_i32_1 = arith.constant 0 : i32
    return %c0_i32, %c0_i32_0 : i32, i32
  }
  func.func @transform_3(%arg0: i32) -> (i32, i32) {
    %c0_i32 = arith.constant 0 : i32
    %c0_i32_0 = arith.constant 0 : i32
    return %arg0, %c0_i32 : i32, i32
  }
}

module attributes {stable_mosaic.version = 11 : i64} {
  func.func @_linear_kernel(%arg0: i32, %arg1: memref<16x128xbf16, #tpu.memory_space<vmem>>, %arg2: memref<128x128xbf16, #tpu.memory_space<vmem>>, %arg3: memref<1x128xf32, #tpu.memory_space<vmem>>, %arg4: memref<16x128xf32, #tpu.memory_space<vmem>>) attributes {dimension_semantics = [#tpu.dimension_semantics<parallel>], iteration_bounds = array<i64: 1>, scalar_prefetch = 0 : i64, scratch_operands = 0 : i64, tpu.core_type = #tpu.core_type<tc>, window_params = [{transform_indices = @transform_0, window_bounds = array<i64: 16, 128>}, {pipeline_mode = #tpu.pipeline_mode<synchronous>, transform_indices = @transform_1, window_bounds = array<i64: 128, 128>}, {pipeline_mode = #tpu.pipeline_mode<synchronous>, transform_indices = @transform_2, window_bounds = array<i64: 1, 128>}, {transform_indices = @transform_3, window_bounds = array<i64: 16, 128>}]} {
    %c0 = arith.constant 0 : index
    %c0_0 = arith.constant 0 : index
    %0 = vector.load %arg1[%c0, %c0_0] : memref<16x128xbf16, #tpu.memory_space<vmem>>, vector<16x128xbf16>
    %c0_1 = arith.constant 0 : index
    %c0_2 = arith.constant 0 : index
    %1 = vector.load %arg2[%c0_1, %c0_2] : memref<128x128xbf16, #tpu.memory_space<vmem>>, vector<128x128xbf16>
    %cst = arith.constant dense<0.000000e+00> : vector<16x128xf32>
    %2 = tpu.matmul %0, %1, %cst {dimension_numbers = #tpu.dot_dimension_numbers<[1], [0], [0], [1], [0, 0, 1, 1], [], []>} : vector<16x128xbf16>, vector<128x128xbf16>, vector<16x128xf32> -> vector<16x128xf32>
    %c0_3 = arith.constant 0 : index
    %c0_4 = arith.constant 0 : index
    %3 = vector.load %arg3[%c0_3, %c0_4] : memref<1x128xf32, #tpu.memory_space<vmem>>, vector<1x128xf32>
    %4 = vector.broadcast %3 : vector<1x128xf32> to vector<16x128xf32>
    %5 = arith.addf %2, %4 : vector<16x128xf32>
    %c0_5 = arith.constant 0 : index
    %c0_6 = arith.constant 0 : index
    %6 = vector.load %arg4[%c0_5, %c0_6] : memref<16x128xf32, #tpu.memory_space<vmem>>, vector<16x128xf32>
    tpu.vector_store %arg4[%c0_5, %c0_6], %5 {strides = array<i32>} : memref<16x128xf32, #tpu.memory_space<vmem>>, vector<16x128xf32>,
    return
  }
  func.func @transform_0(%arg0: i32) -> (i32, i32) {
    %c0_i32 = arith.constant 0 : i32
    %c0_i32_0 = arith.constant 0 : i32
    return %arg0, %c0_i32 : i32, i32
  }
  func.func @transform_1(%arg0: i32) -> (i32, i32) {
    %c0_i32 = arith.constant 0 : i32
    %c0_i32_0 = arith.constant 0 : i32
    %c0_i32_1 = arith.constant 0 : i32
    return %c0_i32, %c0_i32_0 : i32, i32
  }
  func.func @transform_2(%arg0: i32) -> (i32, i32) {
    %c0_i32 = arith.constant 0 : i32
    %c0_i32_0 = arith.constant 0 : i32
    %c0_i32_1 = arith.constant 0 : i32
    return %c0_i32, %c0_i32_0 : i32, i32
  }
  func.func @transform_3(%arg0: i32) -> (i32, i32) {
    %c0_i32 = arith.constant 0 : i32
    %c0_i32_0 = arith.constant 0 : i32
    return %arg0, %c0_i32 : i32, i32
  }
}

</mosaic_0001>

<llo_original>
// kernel: tpu_custom_call.1
$region0: #{tpu_custom_call.1}
  #allocation0 [shape = 'u32[]', space=smem, size = 0x4, offset = 0x4, fixed_abs, tag = 'smem constant byte address 0x4 - core index']
  #allocation1 [shape = 'u32[144,128]{1,0:T(1,128)}', space=vmem, size = 0x12000, scoped, tag = 'internal scratch']
  %s0 = inlined_call_operand.hbm [shape: bf16[16,128], index: 0, kind: input, shape index: {}]
  %s1 = inlined_call_operand.hbm [shape: bf16[128,128], index: 1, kind: input, shape index: {}]
  %s2 = inlined_call_operand.vmem [shape: f32[1,128], index: 2, kind: input, shape index: {}]
  %s3 = inlined_call_operand.hbm [shape: f32[16,128], index: 3, kind: output, shape index: {}]
  %s4 = sld [smem:[#allocation0]]
  $region30: #{tpu_custom_call.1} parent=0
    _
  %s6 = ssub.s32 1, %s4
  %s7 = scalar_select 0, %s6, %s4
  $region1: #{tpu_custom_call.1} parent=0
    #allocation2 [shape = 'u8[4096]{0}', space=vmem, size = 0x1000, scoped, tag = 'input window, operand 0, single buffered']
    #allocation3 [shape = 's32[1]{0}', space=sflag, size = 0x4, scoped, tag = 'scoped memory for tpu_custom_call.1']
    #allocation4 [shape = 's32[1]{0}', space=sflag, size = 0x4, scoped, tag = 'scoped memory for tpu_custom_call.1']
    #allocation5 [shape = 'u8[32768]{0}', space=vmem, size = 0x8000, scoped, tag = 'input window, operand 1, single buffered']
    #allocation6 [shape = 's32[1]{0}', space=sflag, size = 0x4, scoped, tag = 'scoped memory for tpu_custom_call.1']
    #allocation7 [shape = 'u8[8192]{0}', space=vmem, size = 0x2000, scoped, tag = 'output window, operand 0, single buffered']
    %8 = vsyncpa [#allocation3], 0
    %9 = vsyncpa [#allocation6], 0
    %10 = vsyncpa [#allocation4], 0
    // Predicated region
    $region2: #{tpu_custom_call.1} parent=1 // pred_check
      _
    $region3: #{tpu_custom_call.1} parent=1 // pred_check_branch
      %12 = sbr.rel (0) target = $region5
    $region4: #{tpu_custom_call.1} parent=1 // pred_region
      %s14 = ssub.s32 128, 128
      %15 = vsyncadd [#allocation3], %s14
      %s16 = sshll.u32 [#allocation2], 4
      %s17 = int_to_ptr.vmem [resolvable:$true] %s16
      %22 = dma.hbm_to_vmem [thread:$0]  %s0, 128, %s17, [#allocation3], 64, 64, 4
    $region5: #{tpu_custom_call.1} parent=1 // pred_fallthru
      _
    // Predicated region
    $region6: #{tpu_custom_call.1} parent=1 // pred_check
      _
    $region7: #{tpu_custom_call.1} parent=1 // pred_check_branch
      %24 = sbr.rel (0) target = $region9
    $region8: #{tpu_custom_call.1} parent=1 // pred_region
      %s26 = ssub.s32 1024, 1024
      %27 = vsyncadd [#allocation6], %s26
      %s28 = sshll.u32 [#allocation5], 4
      %s29 = int_to_ptr.vmem [resolvable:$true] %s28
      %34 = dma.hbm_to_vmem [thread:$0]  %s1, 1024, %s29, [#allocation6], 64, 64, 4
    $region9: #{tpu_custom_call.1} parent=1 // pred_fallthru
      _
    // Predicated region
    $region10: #{tpu_custom_call.1} parent=1 // pred_check
      _
    $region11: #{tpu_custom_call.1} parent=1 // pred_check_branch
      %36 = sbr.rel (0) target = $region13
    $region12: #{tpu_custom_call.1} parent=1 // pred_region
      _
    $region13: #{tpu_custom_call.1} parent=1 // pred_fallthru
      _
    // Predicated region
    $region14: #{tpu_custom_call.1} parent=1 // pred_check
      _
    $region15: #{tpu_custom_call.1} parent=1 // pred_check_branch
      %38 = sbr.rel (0) target = $region17
    $region16: #{tpu_custom_call.1} parent=1 // pred_region
      %39 = dma.done [#allocation3], 128
    $region17: #{tpu_custom_call.1} parent=1 // pred_fallthru
      _
    // Predicated region
    $region18: #{tpu_custom_call.1} parent=1 // pred_check
      _
    $region19: #{tpu_custom_call.1} parent=1 // pred_check_branch
      %41 = sbr.rel (0) target = $region21
    $region20: #{tpu_custom_call.1} parent=1 // pred_region
      %42 = dma.done [#allocation6], 1024
    $region21: #{tpu_custom_call.1} parent=1 // pred_fallthru
      _
    %v44 = vld [vmem:[#allocation2] sm:$0xf]
    %v45 = vld [vmem:[#allocation2 + $0x4] sm:$0xf]
    %v46 = vld [vmem:[#allocation5] sm:$0xf]
    %v47 = vld [vmem:[#allocation5 + $0x4] sm:$0xf]
    %v48 = vld [vmem:[#allocation5 + $0x8] sm:$0xf]
    %v49 = vld [vmem:[#allocation5 + $0xc] sm:$0xf]
    %v50 = vld [vmem:[#allocation5 + $0x10] sm:$0xf]
    %v51 = vld [vmem:[#allocation5 + $0x14] sm:$0xf]
    %v52 = vld [vmem:[#allocation5 + $0x18] sm:$0xf]
    %v53 = vld [vmem:[#allocation5 + $0x1c] sm:$0xf]
    %v54 = vld [vmem:[#allocation5 + $0x20] sm:$0xf]
    %v55 = vld [vmem:[#allocation5 + $0x24] sm:$0xf]
    %v56 = vld [vmem:[#allocation5 + $0x28] sm:$0xf]
    %v57 = vld [vmem:[#allocation5 + $0x2c] sm:$0xf]
    %v58 = vld [vmem:[#allocation5 + $0x30] sm:$0xf]
    %v59 = vld [vmem:[#allocation5 + $0x34] sm:$0xf]
    %v60 = vld [vmem:[#allocation5 + $0x38] sm:$0xf]
    %v61 = vld [vmem:[#allocation5 + $0x3c] sm:$0xf]
    %v62 = vld [vmem:[%s2] sm:$0x1]
    %v64 = vlaneseq
    %v65 = vshrl.u32 %v64, 7
    %v66 = vsub.s32 0, %v65
    %v67 = vrot.slane %v62, %v66
    %v71 = vunpack.c.l.b16 %v44
    %v72 = vunpack.c.l.b16 %v45
    %v73 = vpack.c.b16 %v72, %v71
    %v91 = vunpack.c.l.b16 %v46
    %v92 = vunpack.c.l.b16 %v47
    %v93 = vunpack.c.l.b16 %v48
    %v94 = vunpack.c.l.b16 %v49
    %v95 = vunpack.c.l.b16 %v50
    %v96 = vunpack.c.l.b16 %v51
    %v97 = vunpack.c.l.b16 %v52
    %v98 = vunpack.c.l.b16 %v53
    %v99 = vunpack.c.l.b16 %v54
    %v100 = vunpack.c.l.b16 %v55
    %v101 = vunpack.c.l.b16 %v56
    %v102 = vunpack.c.l.b16 %v57
    %v103 = vunpack.c.l.b16 %v58
    %v104 = vunpack.c.l.b16 %v59
    %v105 = vunpack.c.l.b16 %v60
    %v106 = vunpack.c.l.b16 %v61
    %v107 = vpack.c.b16 %v92, %v91
    %v108 = vpack.c.b16 %v94, %v93
    %v109 = vpack.c.b16 %v96, %v95
    %v110 = vpack.c.b16 %v98, %v97
    %v111 = vpack.c.b16 %v100, %v99
    %v112 = vpack.c.b16 %v102, %v101
    %v113 = vpack.c.b16 %v104, %v103
    %v114 = vpack.c.b16 %v106, %v105
    %123 = vmatprep.subr.bf16.mxu0 0
    %124 = vmatpush1.bf16.msra.mxu0 %v107
    %125 = vmatprep.subr.bf16.mxu0 0
    %126 = vmatpush1.bf16.msra.mxu0 %v108
    %127 = vmatprep.subr.bf16.mxu0 0
    %128 = vmatpush1.bf16.msra.mxu0 %v109
    %129 = vmatprep.subr.bf16.mxu0 0
    %130 = vmatpush1.bf16.msra.mxu0 %v110
    %131 = vmatprep.subr.bf16.mxu0 0
    %132 = vmatpush1.bf16.msra.mxu0 %v111
    %133 = vmatprep.subr.bf16.mxu0 0
    %134 = vmatpush1.bf16.msra.mxu0 %v112
    %135 = vmatprep.subr.bf16.mxu0 0
    %136 = vmatpush1.bf16.msra.mxu0 %v113
    %137 = vmatprep.subr.bf16.mxu0 0
    %138 = vmatpush1.bf16.msra.mxu0 %v114
    %139 = vmatprep.subr.bf16.mxu0 0
    %140 = vmatpush1.bf16.msra.mxu0 0
    %141 = vmatprep.subr.bf16.mxu0 0
    %142 = vmatpush1.bf16.msra.mxu0 0
    %143 = vmatprep.subr.bf16.mxu0 0
    %144 = vmatpush1.bf16.msra.mxu0 0
    %145 = vmatprep.subr.bf16.mxu0 0
    %146 = vmatpush1.bf16.msra.mxu0 0
    %147 = vmatprep.subr.bf16.mxu0 0
    %148 = vmatpush1.bf16.msra.mxu0 0
    %149 = vmatprep.subr.bf16.mxu0 0
    %150 = vmatpush1.bf16.msra.mxu0 0
    %151 = vmatprep.subr.bf16.mxu0 0
    %152 = vmatpush1.bf16.msra.mxu0 0
    %153 = vmatprep.subr.bf16.mxu0 0
    %154 = vmatpush1.bf16.msra.mxu0 0
    %155 = vmatprep.mubr.bf16.mxu0 0
    %156 = vmatmul.mubr.bf16.gmra.mrb[0].mxu0 %v73
    %v157 = vpop.f32.mrb[0].mxu0
    %v158 = vadd.f32 %v67, %v157
    %v159 = vpop.f32.mrb[0].mxu0
    %v160 = vpop.f32.mrb[0].mxu0
    %v161 = vadd.f32 %v67, %v160
    %v162 = vpop.f32.mrb[0].mxu0
    %163 = vdwg.mxu0
    %164 = vst [vmem:[#allocation7] sm:$0xff] %v158
    %165 = vst [vmem:[#allocation7 + $0x8] sm:$0xff] %v161
    // Predicated region
    $region22: #{tpu_custom_call.1} parent=1 // pred_check
      _
    $region23: #{tpu_custom_call.1} parent=1 // pred_check_branch
      %167 = sbr.rel (0) target = $region25
    $region24: #{tpu_custom_call.1} parent=1 // pred_region
      %s169 = ssub.s32 256, 256
      %170 = vsyncadd [#allocation4], %s169
      %s171 = sshll.u32 [#allocation7], 4
      %s172 = int_to_ptr.vmem [resolvable:$true] %s171
      %177 = dma.vmem_to_hbm [thread:$0]  %s172, 256, %s3, [#allocation4], 128, 128, 8
    $region25: #{tpu_custom_call.1} parent=1 // pred_fallthru
      _
    // Predicated region
    $region26: #{tpu_custom_call.1} parent=1 // pred_check
      _
    $region27: #{tpu_custom_call.1} parent=1 // pred_check_branch
      %179 = sbr.rel (0) target = $region29
    $region28: #{tpu_custom_call.1} parent=1 // pred_region
      %180 = dma.done [#allocation4], 256
    $region29: #{tpu_custom_call.1} parent=1 // pred_fallthru
      _
    %181 = vsyncpa [#allocation3], 1
    %182 = vsyncpa [#allocation6], 1
    %183 = vsyncpa [#allocation4], 1

// kernel: tpu_custom_call.1
$region0: #{tpu_custom_call.1}
  #allocation0 [shape = 'u32[]', space=smem, size = 0x4, offset = 0x4, fixed_abs, tag = 'smem constant byte address 0x4 - core index']
  #allocation1 [shape = 'u32[144,128]{1,0:T(1,128)}', space=vmem, size = 0x12000, scoped, tag = 'internal scratch']
  %s0 = inlined_call_operand.hbm [shape: bf16[16,128], index: 0, kind: input, shape index: {}]
  %s1 = inlined_call_operand.hbm [shape: bf16[128,128], index: 1, kind: input, shape index: {}]
  %s2 = inlined_call_operand.vmem [shape: f32[1,128], index: 2, kind: input, shape index: {}]
  %s3 = inlined_call_operand.hbm [shape: f32[16,128], index: 3, kind: output, shape index: {}]
  %s4 = sld [smem:[#allocation0]]
  $region30: #{tpu_custom_call.1} parent=0
    _
  %s6 = ssub.s32 1, %s4
  %s7 = scalar_select 0, %s6, %s4
  $region1: #{tpu_custom_call.1} parent=0
    #allocation2 [shape = 'u8[4096]{0}', space=vmem, size = 0x1000, scoped, tag = 'input window, operand 0, single buffered']
    #allocation3 [shape = 's32[1]{0}', space=sflag, size = 0x4, scoped, tag = 'scoped memory for tpu_custom_call.1']
    #allocation4 [shape = 's32[1]{0}', space=sflag, size = 0x4, scoped, tag = 'scoped memory for tpu_custom_call.1']
    #allocation5 [shape = 'u8[32768]{0}', space=vmem, size = 0x8000, scoped, tag = 'input window, operand 1, single buffered']
    #allocation6 [shape = 's32[1]{0}', space=sflag, size = 0x4, scoped, tag = 'scoped memory for tpu_custom_call.1']
    #allocation7 [shape = 'u8[8192]{0}', space=vmem, size = 0x2000, scoped, tag = 'output window, operand 0, single buffered']
    %8 = vsyncpa [#allocation3], 0
    %9 = vsyncpa [#allocation6], 0
    %10 = vsyncpa [#allocation4], 0
    // Predicated region
    $region2: #{tpu_custom_call.1} parent=1 // pred_check
      _
    $region3: #{tpu_custom_call.1} parent=1 // pred_check_branch
      %12 = sbr.rel (0) target = $region5
    $region4: #{tpu_custom_call.1} parent=1 // pred_region
      %s14 = ssub.s32 128, 128
      %15 = vsyncadd [#allocation3], %s14
      %s16 = sshll.u32 [#allocation2], 4
      %s17 = int_to_ptr.vmem [resolvable:$true] %s16
      %22 = dma.hbm_to_vmem [thread:$0]  %s0, 128, %s17, [#allocation3], 64, 64, 4
    $region5: #{tpu_custom_call.1} parent=1 // pred_fallthru
      _
    // Predicated region
    $region6: #{tpu_custom_call.1} parent=1 // pred_check
      _
    $region7: #{tpu_custom_call.1} parent=1 // pred_check_branch
      %24 = sbr.rel (0) target = $region9
    $region8: #{tpu_custom_call.1} parent=1 // pred_region
      %s26 = ssub.s32 1024, 1024
      %27 = vsyncadd [#allocation6], %s26
      %s28 = sshll.u32 [#allocation5], 4
      %s29 = int_to_ptr.vmem [resolvable:$true] %s28
      %34 = dma.hbm_to_vmem [thread:$0]  %s1, 1024, %s29, [#allocation6], 64, 64, 4
    $region9: #{tpu_custom_call.1} parent=1 // pred_fallthru
      _
    // Predicated region
    $region10: #{tpu_custom_call.1} parent=1 // pred_check
      _
    $region11: #{tpu_custom_call.1} parent=1 // pred_check_branch
      %36 = sbr.rel (0) target = $region13
    $region12: #{tpu_custom_call.1} parent=1 // pred_region
      _
    $region13: #{tpu_custom_call.1} parent=1 // pred_fallthru
      _
    // Predicated region
    $region14: #{tpu_custom_call.1} parent=1 // pred_check
      _
    $region15: #{tpu_custom_call.1} parent=1 // pred_check_branch
      %38 = sbr.rel (0) target = $region17
    $region16: #{tpu_custom_call.1} parent=1 // pred_region
      %39 = dma.done [#allocation3], 128
    $region17: #{tpu_custom_call.1} parent=1 // pred_fallthru
      _
    // Predicated region
    $region18: #{tpu_custom_call.1} parent=1 // pred_check
      _
    $region19: #{tpu_custom_call.1} parent=1 // pred_check_branch
      %41 = sbr.rel (0) target = $region21
    $region20: #{tpu_custom_call.1} parent=1 // pred_region
      %42 = dma.done [#allocation6], 1024
    $region21: #{tpu_custom_call.1} parent=1 // pred_fallthru
      _
    %v44 = vld [vmem:[#allocation2] sm:$0xf]
    %v45 = vld [vmem:[#allocation2 + $0x4] sm:$0xf]
    %v46 = vld [vmem:[#allocation5] sm:$0xf]
    %v47 = vld [vmem:[#allocation5 + $0x4] sm:$0xf]
    %v48 = vld [vmem:[#allocation5 + $0x8] sm:$0xf]
    %v49 = vld [vmem:[#allocation5 + $0xc] sm:$0xf]
    %v50 = vld [vmem:[#allocation5 + $0x10] sm:$0xf]
    %v51 = vld [vmem:[#allocation5 + $0x14] sm:$0xf]
    %v52 = vld [vmem:[#allocation5 + $0x18] sm:$0xf]
    %v53 = vld [vmem:[#allocation5 + $0x1c] sm:$0xf]
    %v54 = vld [vmem:[#allocation5 + $0x20] sm:$0xf]
    %v55 = vld [vmem:[#allocation5 + $0x24] sm:$0xf]
    %v56 = vld [vmem:[#allocation5 + $0x28] sm:$0xf]
    %v57 = vld [vmem:[#allocation5 + $0x2c] sm:$0xf]
    %v58 = vld [vmem:[#allocation5 + $0x30] sm:$0xf]
    %v59 = vld [vmem:[#allocation5 + $0x34] sm:$0xf]
    %v60 = vld [vmem:[#allocation5 + $0x38] sm:$0xf]
    %v61 = vld [vmem:[#allocation5 + $0x3c] sm:$0xf]
    %v62 = vld [vmem:[%s2] sm:$0x1]
    %v64 = vlaneseq
    %v65 = vshrl.u32 %v64, 7
    %v66 = vsub.s32 0, %v65
    %v67 = vrot.slane %v62, %v66
    %v71 = vunpack.c.l.b16 %v44
    %v72 = vunpack.c.l.b16 %v45
    %v73 = vpack.c.b16 %v72, %v71
    %v91 = vunpack.c.l.b16 %v46
    %v92 = vunpack.c.l.b16 %v47
    %v93 = vunpack.c.l.b16 %v48
    %v94 = vunpack.c.l.b16 %v49
    %v95 = vunpack.c.l.b16 %v50
    %v96 = vunpack.c.l.b16 %v51
    %v97 = vunpack.c.l.b16 %v52
    %v98 = vunpack.c.l.b16 %v53
    %v99 = vunpack.c.l.b16 %v54
    %v100 = vunpack.c.l.b16 %v55
    %v101 = vunpack.c.l.b16 %v56
    %v102 = vunpack.c.l.b16 %v57
    %v103 = vunpack.c.l.b16 %v58
    %v104 = vunpack.c.l.b16 %v59
    %v105 = vunpack.c.l.b16 %v60
    %v106 = vunpack.c.l.b16 %v61
    %v107 = vpack.c.b16 %v92, %v91
    %v108 = vpack.c.b16 %v94, %v93
    %v109 = vpack.c.b16 %v96, %v95
    %v110 = vpack.c.b16 %v98, %v97
    %v111 = vpack.c.b16 %v100, %v99
    %v112 = vpack.c.b16 %v102, %v101
    %v113 = vpack.c.b16 %v104, %v103
    %v114 = vpack.c.b16 %v106, %v105
    %123 = vmatprep.subr.bf16.mxu0 0
    %124 = vmatpush1.bf16.msra.mxu0 %v107
    %125 = vmatprep.subr.bf16.mxu0 0
    %126 = vmatpush1.bf16.msra.mxu0 %v108
    %127 = vmatprep.subr.bf16.mxu0 0
    %128 = vmatpush1.bf16.msra.mxu0 %v109
    %129 = vmatprep.subr.bf16.mxu0 0
    %130 = vmatpush1.bf16.msra.mxu0 %v110
    %131 = vmatprep.subr.bf16.mxu0 0
    %132 = vmatpush1.bf16.msra.mxu0 %v111
    %133 = vmatprep.subr.bf16.mxu0 0
    %134 = vmatpush1.bf16.msra.mxu0 %v112
    %135 = vmatprep.subr.bf16.mxu0 0
    %136 = vmatpush1.bf16.msra.mxu0 %v113
    %137 = vmatprep.subr.bf16.mxu0 0
    %138 = vmatpush1.bf16.msra.mxu0 %v114
    %139 = vmatprep.subr.bf16.mxu0 0
    %140 = vmatpush1.bf16.msra.mxu0 0
    %141 = vmatprep.subr.bf16.mxu0 0
    %142 = vmatpush1.bf16.msra.mxu0 0
    %143 = vmatprep.subr.bf16.mxu0 0
    %144 = vmatpush1.bf16.msra.mxu0 0
    %145 = vmatprep.subr.bf16.mxu0 0
    %146 = vmatpush1.bf16.msra.mxu0 0
    %147 = vmatprep.subr.bf16.mxu0 0
    %148 = vmatpush1.bf16.msra.mxu0 0
    %149 = vmatprep.subr.bf16.mxu0 0
    %150 = vmatpush1.bf16.msra.mxu0 0
    %151 = vmatprep.subr.bf16.mxu0 0
    %152 = vmatpush1.bf16.msra.mxu0 0
    %153 = vmatprep.subr.bf16.mxu0 0
    %154 = vmatpush1.bf16.msra.mxu0 0
    %155 = vmatprep.mubr.bf16.mxu0 0
    %156 = vmatmul.mubr.bf16.gmra.mrb[0].mxu0 %v73
    %v157 = vpop.f32.mrb[0].mxu0
    %v158 = vadd.f32 %v67, %v157
    %v159 = vpop.f32.mrb[0].mxu0
    %v160 = vpop.f32.mrb[0].mxu0
    %v161 = vadd.f32 %v67, %v160
    %v162 = vpop.f32.mrb[0].mxu0
    %163 = vdwg.mxu0
    %164 = vst [vmem:[#allocation7] sm:$0xff] %v158
    %165 = vst [vmem:[#allocation7 + $0x8] sm:$0xff] %v161
    // Predicated region
    $region22: #{tpu_custom_call.1} parent=1 // pred_check
      _
    $region23: #{tpu_custom_call.1} parent=1 // pred_check_branch
      %167 = sbr.rel (0) target = $region25
    $region24: #{tpu_custom_call.1} parent=1 // pred_region
      %s169 = ssub.s32 256, 256
      %170 = vsyncadd [#allocation4], %s169
      %s171 = sshll.u32 [#allocation7], 4
      %s172 = int_to_ptr.vmem [resolvable:$true] %s171
      %177 = dma.vmem_to_hbm [thread:$0]  %s172, 256, %s3, [#allocation4], 128, 128, 8
    $region25: #{tpu_custom_call.1} parent=1 // pred_fallthru
      _
    // Predicated region
    $region26: #{tpu_custom_call.1} parent=1 // pred_check
      _
    $region27: #{tpu_custom_call.1} parent=1 // pred_check_branch
      %179 = sbr.rel (0) target = $region29
    $region28: #{tpu_custom_call.1} parent=1 // pred_region
      %180 = dma.done [#allocation4], 256
    $region29: #{tpu_custom_call.1} parent=1 // pred_fallthru
      _
    %181 = vsyncpa [#allocation3], 1
    %182 = vsyncpa [#allocation6], 1
    %183 = vsyncpa [#allocation4], 1

</llo_original>
